<compile_context>
chip_gen: v5e
topology: v5e:2x2
jax: 0.10.0
libtpu: 0.0.40
codegen_flags: <defaults>
</compile_context>

<pallas_src>
import functools

import jax
import jax.numpy as jnp
from jax import lax
from jax.experimental import pallas as pl
from jax.experimental.pallas import tpu as pltpu

H = 32        # hidden_size
V = 64        # output_size (vocabulary)
T = 7         # encoder steps (fixed by `.expand(7, hidden_size)` in the module)
WK = 7        # weekday vocabulary
DD = 14       # deltaday vocabulary
E_ATTR = 10   # weekday / deltaday embedding dim
LANES = 128

# --- packed parameter slab layout (rows of a (TOTAL_ROWS, 128) f32 slab) ---
EMB_OFF = 0                      # (V, H)    embedding    @ AC_we   (pre-projected)
WK_OFF = EMB_OFF + V             # (WK, H)   weekdayEmb   @ AC_wwk  (7 rows, pad to 8)
DD_OFF = WK_OFF + 8              # (DD, H)   deltadayEmb  @ AC_wdd  (14 rows, pad to 16)
WD_OFF = DD_OFF + 16             # (2H, H)   WD weight^T  (row blocks: [h | c])
UD_OFF = WD_OFF + 2 * H          # (H, H)    UD weight^T
AC_OFF = UD_OFF + H              # (H, H)    attn_combine weight^T, attention block
LSTM_OFF = AC_OFF + H            # (2H, 4H)  vstack(W_ih^T, W_hh^T), gate order [i|f|g|o]
OUT_OFF = LSTM_OFF + 2 * H       # (H, V)    out weight^T
BIAS_OFF = OUT_OFF + H           # 5 bias rows (see pack_params)
TOTAL_ROWS = BIAS_OFF + 8        # = 320  -> slab is 320 x 128 x 4B = 160 KB


def attn_decoder_kernel(proj_ref, slab_ref, enc_ref, state_ref,
                        main_ref, attn_ref, *, n_steps, unroll):
    f32 = jnp.float32

    # ---- loop-invariant hoists: weights / biases / UD(enc) / attn_combine fold ----
    enc = enc_ref[...]                                             # (T, H)
    ud_w = slab_ref[UD_OFF:UD_OFF + H, 0:H]                        # (H, H)
    ac_wa = slab_ref[AC_OFF:AC_OFF + H, 0:H]                       # (H, H)
    attn_b = slab_ref[BIAS_OFF + 0:BIAS_OFF + 1, 0:H]              # (1, H) = wd_b + ud_b
    enc_hts = jnp.dot(enc, ud_w, preferred_element_type=f32) + attn_b   # (T, H)
    enc_ac = jnp.dot(enc, ac_wa, preferred_element_type=f32)            # (T, H)  attn_combine fold

    wd_h = slab_ref[WD_OFF:WD_OFF + H, 0:H]                        # WD block acting on h
    wd_c = slab_ref[WD_OFF + H:WD_OFF + 2 * H, 0:H]                # WD block acting on c
    vd_row = slab_ref[BIAS_OFF + 1:BIAS_OFF + 2, 0:H]              # (1, H)  VD weight (bias cancels)
    ac_b = slab_ref[BIAS_OFF + 2:BIAS_OFF + 3, 0:H]                # (1, H)
    w_ih_t = slab_ref[LSTM_OFF:LSTM_OFF + H, :]                    # (H, 4H)
    w_hh_t = slab_ref[LSTM_OFF + H:LSTM_OFF + 2 * H, :]            # (H, 4H)
    b_lstm = slab_ref[BIAS_OFF + 3:BIAS_OFF + 4, :]                # (1, 4H) = b_ih + b_hh
    out_w = slab_ref[OUT_OFF:OUT_OFF + H, 0:V]                     # (H, V)
    out_b = slab_ref[BIAS_OFF + 4:BIAS_OFF + 5, 0:V]               # (1, V)

    hc0 = state_ref[...]                                           # (1, 2H): [h | c]
    h0 = hc0[:, 0:H]
    c0 = hc0[:, H:2 * H]

    def step(s, carry):
        h, c = carry

        # h-dependent LSTM gate half: independent of the attention chain -> overlaps it.
        g_h = jnp.dot(h, w_hh_t, preferred_element_type=f32)       # (1, 4H)

        # Pre-gathered, pre-summed, attn_combine-projected embedding rows.
        # TODO(synk): training-mode dropout (p=0.1) not implemented (eval-mode identity).
        proj = proj_ref[pl.ds(s, 1), 0:H]                          # (1, H)

        # --- additive attention over the T encoder steps (lane-major scores) ---
        wd = (jnp.dot(h, wd_h, preferred_element_type=f32)
              + jnp.dot(c, wd_c, preferred_element_type=f32))      # (1, H)
        tanh_m = jnp.tanh(wd + enc_hts)                            # (T, H)
        scores = lax.dot_general(vd_row, tanh_m,
                                 dimension_numbers=(((1,), (1,)), ((), ())),
                                 preferred_element_type=f32)       # (1, T) = vd . tanh_m^T
        mx = jnp.max(scores, axis=1, keepdims=True)
        ex = jnp.exp(scores - mx)
        attn_w = ex * pl.reciprocal(jnp.sum(ex, axis=1, keepdims=True), approx=True)  # (1, T)

        # --- attn_combine + relu (folded: attn @ (enc @ ac_wa)) ---
        x_att = jnp.dot(attn_w, enc_ac, preferred_element_type=f32)    # (1, H)
        x = jnp.maximum(proj + x_att + ac_b, 0.0)

        # --- LSTM cell step (x-half issued here, h-half computed above) ---
        gates = jnp.dot(x, w_ih_t, preferred_element_type=f32) + g_h + b_lstm  # (1, 4H)
        sg = jax.nn.sigmoid(gates)        # full 128-lane activations, sliced afterwards
        tg = jnp.tanh(gates)
        c_new = sg[:, H:2 * H] * c + sg[:, 0:H] * tg[:, 2 * H:3 * H]
        h_new = sg[:, 3 * H:4 * H] * jnp.tanh(c_new)

        # --- output projection + log_softmax ---
        logits = jnp.dot(h_new, out_w, preferred_element_type=f32) + out_b
        lm = jnp.max(logits, axis=1, keepdims=True)
        lse = jnp.log(jnp.sum(jnp.exp(logits - lm), axis=1, keepdims=True)) + lm

        # One unmasked 128-lane store: [logp(64) | h(32) | c(32)].
        main_ref[pl.ds(s, 1), :] = jnp.concatenate(
            [logits - lse, h_new, c_new], axis=1)
        attn_ref[pl.ds(s, 1), :] = attn_w                          # lane-major (1, T) row
        return (h_new, c_new)

    lax.fori_loop(0, n_steps, step, (h0, c0), unroll=unroll)


@functools.lru_cache(maxsize=None)
def _decode_call(n_steps):
    if n_steps <= 8:
        unroll = True               # full unroll: straight-line serial recurrence
    elif n_steps % 4 == 0:
        unroll = 4
    elif n_steps % 2 == 0:
        unroll = 2
    else:
        unroll = 1
    flops = 4 * T * H * H + n_steps * 26000
    return pl.pallas_call(
        functools.partial(attn_decoder_kernel, n_steps=n_steps, unroll=unroll),
        out_shape=(jax.ShapeDtypeStruct((n_steps, 4 * H), jnp.float32),
                   jax.ShapeDtypeStruct((n_steps, T), jnp.float32)),
        in_specs=[pl.BlockSpec(memory_space=pltpu.MemorySpace.VMEM),    # pre-summed emb rows
                  pl.BlockSpec(memory_space=pltpu.MemorySpace.VMEM),    # packed param slab
                  pl.BlockSpec(memory_space=pltpu.MemorySpace.VMEM),    # encoder_outputs
                  pl.BlockSpec(memory_space=pltpu.MemorySpace.VMEM)],   # initial [h|c] row
        out_specs=(pl.BlockSpec(memory_space=pltpu.MemorySpace.VMEM),
                   pl.BlockSpec(memory_space=pltpu.MemorySpace.VMEM)),
        cost_estimate=pl.CostEstimate(
            flops=int(flops),
            transcendentals=int(n_steps * 600),
            bytes_accessed=int(TOTAL_ROWS * LANES * 4 + T * H * 4 + 2 * H * 4
                               + n_steps * (LANES + 4 * H + T) * 4)),
    )


def attn_decoder_decode(slab, tokens, weekdays, deltadays, hidden, cell, encoder_outputs):
    """Fused N-step decode (teacher-forced indices). Returns per-step outputs."""
    n = int(tokens.shape[0])
    tokens = jnp.clip(jnp.asarray(tokens, jnp.int32), 0, V - 1)
    weekdays = jnp.clip(jnp.asarray(weekdays, jnp.int32), 0, WK - 1)
    deltadays = jnp.clip(jnp.asarray(deltadays, jnp.int32), 0, DD - 1)
    # Host-side pre-gather + pre-sum of the attn_combine-projected embedding rows
    # (exact in eval mode; removes per-step dynamic gathers from the kernel).
    proj_all = (slab[EMB_OFF + tokens] + slab[WK_OFF + weekdays]
                + slab[DD_OFF + deltadays]).astype(jnp.float32)          # (N, 128)
    state0 = jnp.concatenate([hidden.reshape(1, H), cell.reshape(1, H)],
                             axis=1).astype(jnp.float32)
    enc = encoder_outputs.astype(jnp.float32)

    main, attn_w = _decode_call(n)(proj_all, slab, enc, state0)
    logp = main[:, 0:V]                      # (N, V)
    h_all = main[:, V:V + H]                 # (N, H)
    c_all = main[:, V + H:V + 2 * H]         # (N, H)
    return logp, h_all, c_all, attn_w        # attn_w: (N, T)


def attn_decoder_forward(slab, token, attr, hidden, cell, encoder_outputs):
    """PyTorch-equivalent single-step forward: hidden/cell (1,1,H), enc (T,H)."""
    logp, h_all, c_all, attn_w = attn_decoder_decode(
        slab, jnp.asarray([token]), jnp.asarray([attr[0]]), jnp.asarray([attr[1]]),
        hidden, cell, encoder_outputs)
    return logp, h_all.reshape(1, 1, H), c_all.reshape(1, 1, H), attn_w


def _mm(a, b):
    return jnp.dot(a, b, precision=jax.lax.Precision.HIGHEST)


def init_params(key):
    """Deterministic raw parameters in PyTorch (out, in) Linear layout."""
    ks = jax.random.split(key, 17)

    def u(k, shape, scale=0.1):
        return jax.random.uniform(k, shape, jnp.float32, -scale, scale)

    raw = dict(
        emb=u(ks[0], (V, H)), wk_emb=u(ks[1], (WK, E_ATTR)), dd_emb=u(ks[2], (DD, E_ATTR)),
        wd_w=u(ks[3], (H, 2 * H)), wd_b=u(ks[4], (H,)),
        ud_w=u(ks[5], (H, H)), ud_b=u(ks[6], (H,)),
        vd_w=u(ks[7], (1, H)), vd_b=u(ks[8], (1,)),
        ac_w=u(ks[9], (H, 2 * H + 2 * E_ATTR)), ac_b=u(ks[10], (H,)),
        w_ih=u(ks[11], (4 * H, H)), w_hh=u(ks[12], (4 * H, H)),
        b_ih=u(ks[13], (4 * H,)), b_hh=u(ks[14], (4 * H,)),
        out_w=u(ks[15], (V, H)), out_b=u(ks[16], (V,)),
    )
    return raw, pack_params(raw)


def pack_params(raw):
    """Pack every parameter into one lane-aligned (TOTAL_ROWS, 128) f32 slab.

    Eval-mode-exact host-side folding: embedding tables are pre-multiplied by their
    attn_combine weight blocks, VD bias is dropped (cancels in the softmax), the
    WD/UD biases are merged, and the two LSTM biases are merged.
    """
    ac_wt = raw["ac_w"].T                                            # (2H + 20, H)
    emb_proj = _mm(raw["emb"], ac_wt[:H])                            # (V, H)
    wk_proj = _mm(raw["wk_emb"], ac_wt[H:H + E_ATTR])                # (WK, H)
    dd_proj = _mm(raw["dd_emb"], ac_wt[H + E_ATTR:H + 2 * E_ATTR])   # (DD, H)
    ac_wa = ac_wt[H + 2 * E_ATTR:]                                   # (H, H)
    w_cat = jnp.concatenate([raw["w_ih"].T, raw["w_hh"].T], axis=0)  # (2H, 4H)

    slab = jnp.zeros((TOTAL_ROWS, LANES), jnp.float32)
    slab = slab.at[EMB_OFF:EMB_OFF + V, :H].set(emb_proj)
    slab = slab.at[WK_OFF:WK_OFF + WK, :H].set(wk_proj)
    slab = slab.at[DD_OFF:DD_OFF + DD, :H].set(dd_proj)
    slab = slab.at[WD_OFF:WD_OFF + 2 * H, :H].set(raw["wd_w"].T)
    slab = slab.at[UD_OFF:UD_OFF + H, :H].set(raw["ud_w"].T)
    slab = slab.at[AC_OFF:AC_OFF + H, :H].set(ac_wa)
    slab = slab.at[LSTM_OFF:LSTM_OFF + 2 * H, :4 * H].set(w_cat)
    slab = slab.at[OUT_OFF:OUT_OFF + H, :V].set(raw["out_w"].T)
    slab = slab.at[BIAS_OFF + 0, :H].set(raw["wd_b"] + raw["ud_b"])
    slab = slab.at[BIAS_OFF + 1, :H].set(raw["vd_w"][0])
    slab = slab.at[BIAS_OFF + 2, :H].set(raw["ac_b"])
    slab = slab.at[BIAS_OFF + 3, :4 * H].set(raw["b_ih"] + raw["b_hh"])
    slab = slab.at[BIAS_OFF + 4, :V].set(raw["out_b"])
    return slab


def reference_forward(raw, token, attr, hidden, cell, encoder_outputs):
    """Pure-JAX transcription of the PyTorch forward (eval-mode dropout)."""
    embedded = raw["emb"][token].reshape(1, -1)
    wk = raw["wk_emb"][attr[0]].reshape(1, -1)
    dd = raw["dd_emb"][attr[1]].reshape(1, -1)
    embedded_combine = jnp.concatenate([embedded, wk, dd], axis=1)        # (1, H + 20)
    ht_cell = jnp.concatenate([hidden[0], cell[0]], axis=1)               # (1, 2H)
    wd = _mm(ht_cell, raw["wd_w"].T) + raw["wd_b"]                        # (1, H)
    enc_hts = _mm(encoder_outputs, raw["ud_w"].T) + raw["ud_b"]           # (T, H)
    scores = _mm(jnp.tanh(wd + enc_hts), raw["vd_w"].T) + raw["vd_b"]     # (T, 1)
    attn_weights = jax.nn.softmax(scores.T, axis=1)                       # (1, T)
    attn_applied = _mm(attn_weights, encoder_outputs)                     # (1, H)
    output = jnp.concatenate([embedded_combine, attn_applied], axis=1)    # (1, 2H + 20)
    x = jnp.maximum(_mm(output, raw["ac_w"].T) + raw["ac_b"], 0.0)
    gates = (_mm(x, raw["w_ih"].T) + raw["b_ih"]
             + _mm(hidden[0], raw["w_hh"].T) + raw["b_hh"])
    i = jax.nn.sigmoid(gates[:, :H]); f = jax.nn.sigmoid(gates[:, H:2 * H])
    g = jnp.tanh(gates[:, 2 * H:3 * H]); o = jax.nn.sigmoid(gates[:, 3 * H:])
    c_new = f * cell[0] + i * g
    h_new = o * jnp.tanh(c_new)
    logp = jax.nn.log_softmax(_mm(h_new, raw["out_w"].T) + raw["out_b"], axis=1)
    return logp, h_new.reshape(1, 1, H), c_new.reshape(1, 1, H), attn_weights


def reference_decode(raw, tokens, weekdays, deltadays, hidden, cell, enc):
    h, c = hidden, cell
    logps, hs, cs, attns = [], [], [], []
    for i in range(int(tokens.shape[0])):
        logp, h, c, attn = reference_forward(
            raw, int(tokens[i]), (int(weekdays[i]), int(deltadays[i])), h, c, enc)
        logps.append(logp); hs.append(h.reshape(1, H))
        cs.append(c.reshape(1, H)); attns.append(attn)
    return (jnp.concatenate(logps, 0), jnp.concatenate(hs, 0),
            jnp.concatenate(cs, 0), jnp.concatenate(attns, 0))


if __name__ == "__main__":
    key = jax.random.PRNGKey(0)
    pkey, ikey = jax.random.split(key)
    raw, slab = init_params(pkey)

    k1, k2, k3, k4 = jax.random.split(ikey, 4)
    hidden = jax.random.uniform(k1, (1, 1, H), jnp.float32, -0.5, 0.5)
    cell = jax.random.uniform(k2, (1, 1, H), jnp.float32, -0.5, 0.5)
    enc = jax.random.uniform(k3, (T, H), jnp.float32, -0.5, 0.5)

    def close(a, b):
        return bool(jnp.allclose(a, b, atol=2e-3, rtol=2e-3))

    # --- single decoder step (module-equivalent forward) ---
    token, attr = 5, (3, 9)
    logp, h1, c1, attn1 = jax.block_until_ready(
        attn_decoder_forward(slab, token, attr, hidden, cell, enc))
    r_logp, r_h, r_c, r_attn = reference_forward(raw, token, attr, hidden, cell, enc)
    ok = (logp.shape == (1, V) and h1.shape == (1, 1, H)
          and c1.shape == (1, 1, H) and attn1.shape == (1, T)
          and close(logp, r_logp) and close(h1, r_h)
          and close(c1, r_c) and close(attn1, r_attn)
          and bool(jnp.all(jnp.isfinite(logp))))

    # --- fused 8-step decode (weights stay register/VMEM-resident across steps) ---
    N = 8
    toks = jax.random.randint(k4, (N,), 0, V)
    wks = jnp.arange(N, dtype=jnp.int32) % WK
    dds = (jnp.arange(N, dtype=jnp.int32) * 3) % DD
    lp_n, h_n, c_n, at_n = jax.block_until_ready(
        attn_decoder_decode(slab, toks, wks, dds, hidden, cell, enc))
    r_lp, r_hs, r_cs, r_ats = reference_decode(raw, toks, wks, dds, hidden, cell, enc)
    ok = (ok and lp_n.shape == (N, V) and at_n.shape == (N, T)
          and close(lp_n, r_lp) and close(h_n, r_hs)
          and close(c_n, r_cs) and close(at_n, r_ats)
          and bool(jnp.all(jnp.isfinite(lp_n))))

    if not ok:
        raise SystemExit("mismatch vs reference")
    print("KERNEL_OK")
</pallas_src>

<mosaic_0001>
module attributes {stable_mosaic.version = 11 : i64} {
  func.func @attn_decoder_kernel(%arg0: memref<1x128xf32, #tpu.memory_space<vmem>>, %arg1: memref<320x128xf32, #tpu.memory_space<vmem>>, %arg2: memref<7x32xf32, #tpu.memory_space<vmem>>, %arg3: memref<1x64xf32, #tpu.memory_space<vmem>>, %arg4: memref<1x128xf32, #tpu.memory_space<vmem>>, %arg5: memref<1x7xf32, #tpu.memory_space<vmem>>) attributes {dimension_semantics = [], scalar_prefetch = 0 : i64, scratch_operands = 0 : i64, tpu.core_type = #tpu.core_type<tc>} {
    %c0 = arith.constant 0 : index
    %c0_0 = arith.constant 0 : index
    %0 = vector.load %arg2[%c0, %c0_0] : memref<7x32xf32, #tpu.memory_space<vmem>>, vector<7x32xf32>
    %c152 = arith.constant 152 : index
    %c0_1 = arith.constant 0 : index
    %1 = vector.load %arg1[%c152, %c0_1] : memref<320x128xf32, #tpu.memory_space<vmem>>, vector<32x32xf32>
    %c184 = arith.constant 184 : index
    %c0_2 = arith.constant 0 : index
    %2 = vector.load %arg1[%c184, %c0_2] : memref<320x128xf32, #tpu.memory_space<vmem>>, vector<32x32xf32>
    %c312 = arith.constant 312 : index
    %c0_3 = arith.constant 0 : index
    %3 = vector.load %arg1[%c312, %c0_3] : memref<320x128xf32, #tpu.memory_space<vmem>>, vector<1x32xf32>
    %cst = arith.constant dense<0.000000e+00> : vector<7x32xf32>
    %4 = tpu.matmul %0, %1, %cst {dimension_numbers = #tpu.dot_dimension_numbers<[1], [0], [0], [1], [0, 0, 1, 1], [], []>} : vector<7x32xf32>, vector<32x32xf32>, vector<7x32xf32> -> vector<7x32xf32>
    %5 = vector.broadcast %3 : vector<1x32xf32> to vector<7x32xf32>
    %6 = arith.addf %4, %5 : vector<7x32xf32>
    %cst_4 = arith.constant dense<0.000000e+00> : vector<7x32xf32>
    %7 = tpu.matmul %0, %2, %cst_4 {dimension_numbers = #tpu.dot_dimension_numbers<[1], [0], [0], [1], [0, 0, 1, 1], [], []>} : vector<7x32xf32>, vector<32x32xf32>, vector<7x32xf32> -> vector<7x32xf32>
    %c88 = arith.constant 88 : index
    %c0_5 = arith.constant 0 : index
    %8 = vector.load %arg1[%c88, %c0_5] : memref<320x128xf32, #tpu.memory_space<vmem>>, vector<32x32xf32>
    %c120 = arith.constant 120 : index
    %c0_6 = arith.constant 0 : index
    %9 = vector.load %arg1[%c120, %c0_6] : memref<320x128xf32, #tpu.memory_space<vmem>>, vector<32x32xf32>
    %c313 = arith.constant 313 : index
    %c0_7 = arith.constant 0 : index
    %10 = vector.load %arg1[%c313, %c0_7] : memref<320x128xf32, #tpu.memory_space<vmem>>, vector<1x32xf32>
    %c314 = arith.constant 314 : index
    %c0_8 = arith.constant 0 : index
    %11 = vector.load %arg1[%c314, %c0_8] : memref<320x128xf32, #tpu.memory_space<vmem>>, vector<1x32xf32>
    %c216 = arith.constant 216 : index
    %c0_9 = arith.constant 0 : index
    %12 = vector.load %arg1[%c216, %c0_9] : memref<320x128xf32, #tpu.memory_space<vmem>>, vector<32x128xf32>
    %c248 = arith.constant 248 : index
    %c0_10 = arith.constant 0 : index
    %13 = vector.load %arg1[%c248, %c0_10] : memref<320x128xf32, #tpu.memory_space<vmem>>, vector<32x128xf32>
    %c315 = arith.constant 315 : index
    %c0_11 = arith.constant 0 : index
    %14 = vector.load %arg1[%c315, %c0_11] : memref<320x128xf32, #tpu.memory_space<vmem>>, vector<1x128xf32>
    %c280 = arith.constant 280 : index
    %c0_12 = arith.constant 0 : index
    %15 = vector.load %arg1[%c280, %c0_12] : memref<320x128xf32, #tpu.memory_space<vmem>>, vector<32x64xf32>
    %c316 = arith.constant 316 : index
    %c0_13 = arith.constant 0 : index
    %16 = vector.load %arg1[%c316, %c0_13] : memref<320x128xf32, #tpu.memory_space<vmem>>, vector<1x64xf32>
    %c0_14 = arith.constant 0 : index
    %c0_15 = arith.constant 0 : index
    %17 = vector.load %arg3[%c0_14, %c0_15] : memref<1x64xf32, #tpu.memory_space<vmem>>, vector<1x64xf32>
    %18 = vector.extract_strided_slice %17 {offsets = [0, 0], sizes = [1, 32], strides = [1, 1]} : vector<1x64xf32> to vector<1x32xf32>
    %19 = vector.extract_strided_slice %17 {offsets = [0, 32], sizes = [1, 32], strides = [1, 1]} : vector<1x64xf32> to vector<1x32xf32>
    %c0_i32 = arith.constant 0 : i32
    %cst_16 = arith.constant dense<0.000000e+00> : vector<1x128xf32>
    %20 = tpu.matmul %18, %13, %cst_16 {dimension_numbers = #tpu.dot_dimension_numbers<[1], [0], [0], [1], [0, 0, 1, 1], [], []>} : vector<1x32xf32>, vector<32x128xf32>, vector<1x128xf32> -> vector<1x128xf32>
    %21 = arith.index_cast %c0_i32 : i32 to index
    %c0_17 = arith.constant 0 : index
    %22 = vector.load %arg0[%21, %c0_17] : memref<1x128xf32, #tpu.memory_space<vmem>>, vector<1x32xf32>
    %cst_18 = arith.constant dense<0.000000e+00> : vector<1x32xf32>
    %23 = tpu.matmul %18, %8, %cst_18 {dimension_numbers = #tpu.dot_dimension_numbers<[1], [0], [0], [1], [0, 0, 1, 1], [], []>} : vector<1x32xf32>, vector<32x32xf32>, vector<1x32xf32> -> vector<1x32xf32>
    %cst_19 = arith.constant dense<0.000000e+00> : vector<1x32xf32>
    %24 = tpu.matmul %19, %9, %cst_19 {dimension_numbers = #tpu.dot_dimension_numbers<[1], [0], [0], [1], [0, 0, 1, 1], [], []>} : vector<1x32xf32>, vector<32x32xf32>, vector<1x32xf32> -> vector<1x32xf32>
    %25 = arith.addf %23, %24 : vector<1x32xf32>
    %26 = vector.broadcast %25 : vector<1x32xf32> to vector<7x32xf32>
    %27 = arith.addf %26, %6 : vector<7x32xf32>
    %28 = math.tanh %27 : vector<7x32xf32>
    %cst_20 = arith.constant dense<0.000000e+00> : vector<1x7xf32>
    %29 = tpu.matmul %10, %28, %cst_20 {dimension_numbers = #tpu.dot_dimension_numbers<[1], [1], [0], [0], [0, 0, 1, 0], [], []>} : vector<1x32xf32>, vector<7x32xf32>, vector<1x7xf32> -> vector<1x7xf32>
    %cst_21 = arith.constant dense<0xFF800000> : vector<1xf32>
    %30 = vector.multi_reduction <maximumf>, %29, %cst_21 [1] : vector<1x7xf32> to vector<1xf32>
    %31 = vector.shape_cast %30 : vector<1xf32> to vector<1x1xf32>
    %32 = vector.broadcast %31 : vector<1x1xf32> to vector<1x7xf32>
    %33 = arith.subf %29, %32 : vector<1x7xf32>
    %34 = math.exp %33 : vector<1x7xf32>
    %cst_22 = arith.constant dense<0.000000e+00> : vector<1xf32>
    %35 = vector.multi_reduction <add>, %34, %cst_22 [1] : vector<1x7xf32> to vector<1xf32>
    %36 = vector.shape_cast %35 : vector<1xf32> to vector<1x1xf32>
    %37 = tpu.reciprocal %36 {approx = true} : vector<1x1xf32> -> vector<1x1xf32>
    %38 = vector.broadcast %37 : vector<1x1xf32> to vector<1x7xf32>
    %39 = arith.mulf %34, %38 : vector<1x7xf32>
    %cst_23 = arith.constant dense<0.000000e+00> : vector<1x32xf32>
    %40 = tpu.matmul %39, %7, %cst_23 {dimension_numbers = #tpu.dot_dimension_numbers<[1], [0], [0], [1], [0, 0, 1, 1], [], []>} : vector<1x7xf32>, vector<7x32xf32>, vector<1x32xf32> -> vector<1x32xf32>
    %41 = arith.addf %22, %40 : vector<1x32xf32>
    %42 = arith.addf %41, %11 : vector<1x32xf32>
    %cst_24 = arith.constant 0.000000e+00 : f32
    %43 = vector.broadcast %cst_24 : f32 to vector<1x32xf32>
    %44 = arith.maximumf %42, %43 : vector<1x32xf32>
    %cst_25 = arith.constant dense<0.000000e+00> : vector<1x128xf32>
    %45 = tpu.matmul %44, %12, %cst_25 {dimension_numbers = #tpu.dot_dimension_numbers<[1], [0], [0], [1], [0, 0, 1, 1], [], []>} : vector<1x32xf32>, vector<32x128xf32>, vector<1x128xf32> -> vector<1x128xf32>
    %46 = arith.addf %45, %20 : vector<1x128xf32>
    %47 = arith.addf %46, %14 : vector<1x128xf32>
    %48 = arith.negf %47 : vector<1x128xf32>
    %49 = math.exp %48 : vector<1x128xf32>
    %cst_26 = arith.constant 1.000000e+00 : f32
    %50 = vector.broadcast %cst_26 : f32 to vector<1x128xf32>
    %51 = arith.addf %50, %49 : vector<1x128xf32>
    %52 = arith.divf %50, %51 : vector<1x128xf32>
    %53 = math.tanh %47 : vector<1x128xf32>
    %54 = vector.extract_strided_slice %52 {offsets = [0, 32], sizes = [1, 32], strides = [1, 1]} : vector<1x128xf32> to vector<1x32xf32>
    %55 = arith.mulf %54, %19 : vector<1x32xf32>
    %56 = vector.extract_strided_slice %52 {offsets = [0, 0], sizes = [1, 32], strides = [1, 1]} : vector<1x128xf32> to vector<1x32xf32>
    %57 = vector.extract_strided_slice %53 {offsets = [0, 64], sizes = [1, 32], strides = [1, 1]} : vector<1x128xf32> to vector<1x32xf32>
    %58 = arith.mulf %56, %57 : vector<1x32xf32>
    %59 = arith.addf %55, %58 : vector<1x32xf32>
    %60 = vector.extract_strided_slice %52 {offsets = [0, 96], sizes = [1, 32], strides = [1, 1]} : vector<1x128xf32> to vector<1x32xf32>
    %61 = math.tanh %59 : vector<1x32xf32>
    %62 = arith.mulf %60, %61 : vector<1x32xf32>
    %cst_27 = arith.constant dense<0.000000e+00> : vector<1x64xf32>
    %63 = tpu.matmul %62, %15, %cst_27 {dimension_numbers = #tpu.dot_dimension_numbers<[1], [0], [0], [1], [0, 0, 1, 1], [], []>} : vector<1x32xf32>, vector<32x64xf32>, vector<1x64xf32> -> vector<1x64xf32>
    %64 = arith.addf %63, %16 : vector<1x64xf32>
    %cst_28 = arith.constant dense<0xFF800000> : vector<1xf32>
    %65 = vector.multi_reduction <maximumf>, %64, %cst_28 [1] : vector<1x64xf32> to vector<1xf32>
    %66 = vector.shape_cast %65 : vector<1xf32> to vector<1x1xf32>
    %67 = vector.broadcast %66 : vector<1x1xf32> to vector<1x64xf32>
    %68 = arith.subf %64, %67 : vector<1x64xf32>
    %69 = math.exp %68 : vector<1x64xf32>
    %cst_29 = arith.constant dense<0.000000e+00> : vector<1xf32>
    %70 = vector.multi_reduction <add>, %69, %cst_29 [1] : vector<1x64xf32> to vector<1xf32>
    %71 = vector.shape_cast %70 : vector<1xf32> to vector<1x1xf32>
    %72 = math.log %71 : vector<1x1xf32>
    %73 = arith.addf %72, %66 : vector<1x1xf32>
    %74 = vector.broadcast %73 : vector<1x1xf32> to vector<1x64xf32>
    %75 = arith.subf %64, %74 : vector<1x64xf32>
    %76 = tpu.concatenate %75, %62, %59 in 1 : vector<1x64xf32>, vector<1x32xf32>, vector<1x32xf32> -> vector<1x128xf32>
    %77 = arith.index_cast %c0_i32 : i32 to index
    %c0_30 = arith.constant 0 : index
    %78 = vector.load %arg4[%77, %c0_30] : memref<1x128xf32, #tpu.memory_space<vmem>>, vector<1x128xf32>
    tpu.vector_store %arg4[%77, %c0_30], %76 {strides = array<i32>} : memref<1x128xf32, #tpu.memory_space<vmem>>, vector<1x128xf32>,
    %79 = arith.index_cast %c0_i32 : i32 to index
    %c0_31 = arith.constant 0 : index
    %80 = vector.load %arg5[%79, %c0_31] : memref<1x7xf32, #tpu.memory_space<vmem>>, vector<1x7xf32>
    tpu.vector_store %arg5[%79, %c0_31], %39 {strides = array<i32>} : memref<1x7xf32, #tpu.memory_space<vmem>>, vector<1x7xf32>,
    %c1_i32 = arith.constant 1 : i32
    return
  }
}

</mosaic_0001>

<llo_original>
// kernel: tpu_custom_call.1
$region0: #{tpu_custom_call.1}
  #allocation0 [shape = 'u32[]', space=smem, size = 0x4, offset = 0x4, fixed_abs, tag = 'smem constant byte address 0x4 - core index']
  #allocation1 [shape = 'u32[72,128]{1,0:T(1,128)}', space=vmem, size = 0x9000, scoped, tag = 'internal scratch']
  %s0 = inlined_call_operand.hbm [shape: f32[1,128], index: 0, kind: input, shape index: {}]
  %s1 = inlined_call_operand.hbm [shape: f32[320,128], index: 1, kind: input, shape index: {}]
  %s2 = inlined_call_operand.hbm [shape: f32[7,32], index: 2, kind: input, shape index: {}]
  %s3 = inlined_call_operand.vmem [shape: f32[1,64], index: 3, kind: input, shape index: {}]
  %s4 = inlined_call_operand.hbm [shape: f32[1,128], index: 4, kind: output, shape index: {0}]
  %s5 = inlined_call_operand.hbm [shape: f32[1,7], index: 5, kind: output, shape index: {1}]
  %6 = xla_tuple %s4, %s5
  %s7 = sld [smem:[#allocation0]]
  $region46: #{tpu_custom_call.1} parent=0
    _
  %s9 = ssub.s32 1, %s7
  %s10 = scalar_select 0, %s9, %s7
  $region1: #{tpu_custom_call.1} parent=0
    #allocation2 [shape = 'u8[512]{0}', space=vmem, size = 0x400, scoped, tag = 'input window, operand 0, single buffered']
    #allocation3 [shape = 's32[1]{0}', space=sflag, size = 0x4, scoped, tag = 'scoped memory for tpu_custom_call.1']
    #allocation4 [shape = 's32[1]{0}', space=sflag, size = 0x4, scoped, tag = 'scoped memory for tpu_custom_call.1']
    #allocation5 [shape = 'u8[163840]{0}', space=vmem, size = 0x28000, scoped, tag = 'input window, operand 1, single buffered']
    #allocation6 [shape = 's32[1]{0}', space=sflag, size = 0x4, scoped, tag = 'scoped memory for tpu_custom_call.1']
    #allocation7 [shape = 'u8[4096]{0}', space=vmem, size = 0x1000, scoped, tag = 'input window, operand 2, single buffered']
    #allocation8 [shape = 'u8[512]{0}', space=vmem, size = 0x400, scoped, tag = 'output window, operand 0, single buffered']
    #allocation9 [shape = 'u8[512]{0}', space=vmem, size = 0x400, scoped, tag = 'output window, operand 1, single buffered']
    #allocation10 [shape = 's32[1]{0}', space=sflag, size = 0x4, scoped, tag = 'scoped memory for tpu_custom_call.1']
    %11 = vsyncpa [#allocation3], 0
    %12 = vsyncpa [#allocation6], 0
    %13 = vsyncpa [#allocation4], 0
    %14 = vsyncpa [#allocation10], 0
    // Predicated region
    $region2: #{tpu_custom_call.1} parent=1 // pred_check
      _
    $region3: #{tpu_custom_call.1} parent=1 // pred_check_branch
      %16 = sbr.rel (0) target = $region5
    $region4: #{tpu_custom_call.1} parent=1 // pred_region
      %18 = vsyncadd [#allocation3], 0
      %s20 = sshll.u32 %s0, 4
      %s21 = int_to_ptr.hbm [resolvable:$true] %s20
      %s22 = sshll.u32 [#allocation2], 4
      %s23 = int_to_ptr.vmem [resolvable:$true] %s22
      %25 = dma.hbm_to_vmem [thread:$0]  %s21, 16, %s23, [#allocation3]
    $region5: #{tpu_custom_call.1} parent=1 // pred_fallthru
      _
    // Predicated region
    $region6: #{tpu_custom_call.1} parent=1 // pred_check
      _
    $region7: #{tpu_custom_call.1} parent=1 // pred_check_branch
      %27 = sbr.rel (0) target = $region9
    $region8: #{tpu_custom_call.1} parent=1 // pred_region
      %29 = vsyncadd [#allocation6], 0
      %s30 = sshll.u32 %s1, 4
      %s31 = int_to_ptr.hbm [resolvable:$true] %s30
      %s32 = sshll.u32 [#allocation5], 4
      %s33 = int_to_ptr.vmem [resolvable:$true] %s32
      %38 = dma.hbm_to_vmem [thread:$0]  %s31, 5120, %s33, [#allocation6], 128, 128, 8
    $region9: #{tpu_custom_call.1} parent=1 // pred_fallthru
      _
    // Predicated region
    $region10: #{tpu_custom_call.1} parent=1 // pred_check
      _
    $region11: #{tpu_custom_call.1} parent=1 // pred_check_branch
      %40 = sbr.rel (0) target = $region13
    $region12: #{tpu_custom_call.1} parent=1 // pred_region
      %42 = vsyncadd [#allocation6], 0
      %s44 = sshll.u32 %s2, 4
      %s45 = int_to_ptr.hbm [resolvable:$true] %s44
      %s46 = sshll.u32 [#allocation7], 4
      %s47 = int_to_ptr.vmem [resolvable:$true] %s46
      %49 = dma.hbm_to_vmem [thread:$0]  %s45, 128, %s47, [#allocation6]
    $region13: #{tpu_custom_call.1} parent=1 // pred_fallthru
      _
    // Predicated region
    $region14: #{tpu_custom_call.1} parent=1 // pred_check
      _
    $region15: #{tpu_custom_call.1} parent=1 // pred_check_branch
      %51 = sbr.rel (0) target = $region17
    $region16: #{tpu_custom_call.1} parent=1 // pred_region
      _
    $region17: #{tpu_custom_call.1} parent=1 // pred_fallthru
      _
    // Predicated region
    $region18: #{tpu_custom_call.1} parent=1 // pred_check
      _
    $region19: #{tpu_custom_call.1} parent=1 // pred_check_branch
      %53 = sbr.rel (0) target = $region21
    $region20: #{tpu_custom_call.1} parent=1 // pred_region
      %55 = dma.done [#allocation3], 16
    $region21: #{tpu_custom_call.1} parent=1 // pred_fallthru
      _
    // Predicated region
    $region22: #{tpu_custom_call.1} parent=1 // pred_check
      _
    $region23: #{tpu_custom_call.1} parent=1 // pred_check_branch
      %57 = sbr.rel (0) target = $region25
    $region24: #{tpu_custom_call.1} parent=1 // pred_region
      %59 = dma.done [#allocation6], 5120
    $region25: #{tpu_custom_call.1} parent=1 // pred_fallthru
      _
    // Predicated region
    $region26: #{tpu_custom_call.1} parent=1 // pred_check
      _
    $region27: #{tpu_custom_call.1} parent=1 // pred_check_branch
      %61 = sbr.rel (0) target = $region29
    $region28: #{tpu_custom_call.1} parent=1 // pred_region
      %63 = dma.done [#allocation6], 128
    $region29: #{tpu_custom_call.1} parent=1 // pred_fallthru
      _
    %v64 = vld [vmem:[#allocation7] sm:$0x7f]
    %v65 = vld [vmem:[#allocation5 + $0x98] sm:$0xff]
    %v66 = vld [vmem:[#allocation5 + $0xa0] sm:$0xff]
    %v67 = vld [vmem:[#allocation5 + $0xa8] sm:$0xff]
    %v68 = vld [vmem:[#allocation5 + $0xb0] sm:$0xff]
    %v69 = vld [vmem:[#allocation5 + $0xb8] sm:$0xff]
    %v70 = vld [vmem:[#allocation5 + $0xc0] sm:$0xff]
    %v71 = vld [vmem:[#allocation5 + $0xc8] sm:$0xff]
    %v72 = vld [vmem:[#allocation5 + $0xd0] sm:$0xff]
    %v73 = vld [vmem:[#allocation5 + $0x138] sm:$0x1]
    %v74 = vperm.slane %v73, 0
    %vm75 = vcmask 261120
    %v77 = vsel %vm75, %v64, 0
    %79 = vmatpush.msra.mxu0 0.0
    %80 = vmatpush.msra.mxu0 0.0
    %81 = vmatpush.msra.mxu0 0.0
    %82 = vmatpush.msra.mxu0 0.0
    %83 = vmatpush.msra.mxu0 0.0
    %84 = vmatpush.msra.mxu0 0.0
    %85 = vmatpush.msra.mxu0 0.0
    %86 = vmatpush.msra.mxu0 0.0
    %87 = vmatpush.msra.mxu0 0.0
    %88 = vmatpush.msra.mxu0 0.0
    %89 = vmatpush.msra.mxu0 0.0
    %90 = vmatpush.msra.mxu0 0.0
    %91 = vmatpush.msra.mxu0 %v68
    %92 = vmatpush.msra.mxu0 %v67
    %93 = vmatpush.msra.mxu0 %v66
    %94 = vmatpush.msra.mxu0 %v65
    %95 = vmatmul.f32.gmra.mxu0 %v77
    %v96 = vpop.f32.mrf.mxu0
    %v97 = vadd.f32 %v74, %v96
    %98 = vdwg.mxu0
    %99 = vmatpush.msra.mxu0 0.0
    %100 = vmatpush.msra.mxu0 0.0
    %101 = vmatpush.msra.mxu0 0.0
    %102 = vmatpush.msra.mxu0 0.0
    %103 = vmatpush.msra.mxu0 0.0
    %104 = vmatpush.msra.mxu0 0.0
    %105 = vmatpush.msra.mxu0 0.0
    %106 = vmatpush.msra.mxu0 0.0
    %107 = vmatpush.msra.mxu0 0.0
    %108 = vmatpush.msra.mxu0 0.0
    %109 = vmatpush.msra.mxu0 0.0
    %110 = vmatpush.msra.mxu0 0.0
    %111 = vmatpush.msra.mxu0 %v72
    %112 = vmatpush.msra.mxu0 %v71
    %113 = vmatpush.msra.mxu0 %v70
    %114 = vmatpush.msra.mxu0 %v69
    %115 = vmatmul.f32.gmra.mxu0 %v77
    %v116 = vpop.f32.mrf.mxu0
    %v117 = vadd.f32 0.0, %v116
    %118 = vdwg.mxu0
    %v119 = vld [vmem:[#allocation5 + $0x58] sm:$0xff]
    %v120 = vld [vmem:[#allocation5 + $0x60] sm:$0xff]
    %v121 = vld [vmem:[#allocation5 + $0x68] sm:$0xff]
    %v122 = vld [vmem:[#allocation5 + $0x70] sm:$0xff]
    %v123 = vld [vmem:[#allocation5 + $0x78] sm:$0xff]
    %v124 = vld [vmem:[#allocation5 + $0x80] sm:$0xff]
    %v125 = vld [vmem:[#allocation5 + $0x88] sm:$0xff]
    %v126 = vld [vmem:[#allocation5 + $0x90] sm:$0xff]
    %v127 = vld [vmem:[#allocation5 + $0x139] sm:$0x1]
    %v128 = vld [vmem:[#allocation5 + $0x13a] sm:$0x1]
    %v129 = vld [vmem:[#allocation5 + $0xd8] sm:$0xff]
    %v130 = vld [vmem:[#allocation5 + $0xe0] sm:$0xff]
    %v131 = vld [vmem:[#allocation5 + $0xe8] sm:$0xff]
    %v132 = vld [vmem:[#allocation5 + $0xf0] sm:$0xff]
    %v133 = vld [vmem:[#allocation5 + $0xf8] sm:$0xff]
    %v134 = vld [vmem:[#allocation5 + $0x100] sm:$0xff]
    %v135 = vld [vmem:[#allocation5 + $0x108] sm:$0xff]
    %v136 = vld [vmem:[#allocation5 + $0x110] sm:$0xff]
    %v137 = vld [vmem:[#allocation5 + $0x13b] sm:$0x1]
    %v138 = vld [vmem:[#allocation5 + $0x118] sm:$0xff]
    %v139 = vld [vmem:[#allocation5 + $0x120] sm:$0xff]
    %v140 = vld [vmem:[#allocation5 + $0x128] sm:$0xff]
    %v141 = vld [vmem:[#allocation5 + $0x130] sm:$0xff]
    %v142 = vld [vmem:[#allocation5 + $0x13c] sm:$0x1]
    %v143 = vld [vmem:[%s3] sm:$0x1]
    %v145 = vsel %vm75, %v143, 0
    %147 = vmatpush.msra.mxu0 0.0
    %148 = vmatpush.msra.mxu0 0.0
    %149 = vmatpush.msra.mxu0 0.0
    %150 = vmatpush.msra.mxu0 0.0
    %151 = vmatpush.msra.mxu0 0.0
    %152 = vmatpush.msra.mxu0 0.0
    %153 = vmatpush.msra.mxu0 0.0
    %154 = vmatpush.msra.mxu0 0.0
    %155 = vmatpush.msra.mxu0 0.0
    %156 = vmatpush.msra.mxu0 0.0
    %157 = vmatpush.msra.mxu0 0.0
    %158 = vmatpush.msra.mxu0 0.0
    %159 = vmatpush.msra.mxu0 %v136
    %160 = vmatpush.msra.mxu0 %v135
    %161 = vmatpush.msra.mxu0 %v134
    %162 = vmatpush.msra.mxu0 %v133
    %163 = vmatmul.f32.gmra.mxu0 %v145
    %v164 = vpop.f32.mrf.mxu0
    %v165 = vadd.f32 0.0, %v164
    %166 = vdwg.mxu0
    %v167 = vld [vmem:[#allocation2] sm:$0x1]
    %v168 = vperm.slane %v143, 0
    %169 = vrot.lane.b32.xlu0 %v168, 96
    %v170 = vpop.permute.xlu0 %169
    %v171 = vsel %vm75, %v170, 0
    %173 = vmatpush.msra.mxu0 0.0
    %174 = vmatpush.msra.mxu0 0.0
    %175 = vmatpush.msra.mxu0 0.0
    %176 = vmatpush.msra.mxu0 0.0
    %177 = vmatpush.msra.mxu0 0.0
    %178 = vmatpush.msra.mxu0 0.0
    %179 = vmatpush.msra.mxu0 0.0
    %180 = vmatpush.msra.mxu0 0.0
    %181 = vmatpush.msra.mxu0 0.0
    %182 = vmatpush.msra.mxu0 0.0
    %183 = vmatpush.msra.mxu0 0.0
    %184 = vmatpush.msra.mxu0 0.0
    %185 = vmatpush.msra.mxu0 %v126
    %186 = vmatpush.msra.mxu0 %v125
    %187 = vmatpush.msra.mxu0 %v124
    %188 = vmatpush.msra.mxu0 %v123
    %189 = vmatmul.f32.gmra.mxu0 %v171
    %v190 = vpop.f32.mrf.mxu0
    %v191 = vadd.f32 0.0, %v190
    %192 = vdwg.mxu0
    %193 = vmatpush.msra.mxu0 0.0
    %194 = vmatpush.msra.mxu0 0.0
    %195 = vmatpush.msra.mxu0 0.0
    %196 = vmatpush.msra.mxu0 0.0
    %197 = vmatpush.msra.mxu0 0.0
    %198 = vmatpush.msra.mxu0 0.0
    %199 = vmatpush.msra.mxu0 0.0
    %200 = vmatpush.msra.mxu0 0.0
    %201 = vmatpush.msra.mxu0 0.0
    %202 = vmatpush.msra.mxu0 0.0
    %203 = vmatpush.msra.mxu0 0.0
    %204 = vmatpush.msra.mxu0 0.0
    %205 = vmatpush.msra.mxu0 %v122
    %206 = vmatpush.msra.mxu0 %v121
    %207 = vmatpush.msra.mxu0 %v120
    %208 = vmatpush.msra.mxu0 %v119
    %209 = vmatmul.f32.gmra.mxu0 %v145
    %v210 = vpop.f32.mrf.mxu0
    %v211 = vadd.f32 %v191, %v210
    %212 = vdwg.mxu0
    %v213 = vperm.slane %v211, 0
    %v214 = vadd.f32 %v213, %v97
    %v215 = vtanh.pop %v214
    %v217 = vsel %vm75, %v127, 0
    %v220 = vsel %vm75, %v215, 0
    %222 = vmatpush.xpose.msra.mxu0 0.0
    %223 = vmatpush.xpose.msra.mxu0 0.0
    %224 = vmatpush.xpose.msra.mxu0 0.0
    %225 = vmatpush.xpose.msra.mxu0 0.0
    %226 = vmatpush.xpose.msra.mxu0 0.0
    %227 = vmatpush.xpose.msra.mxu0 0.0
    %228 = vmatpush.xpose.msra.mxu0 0.0
    %229 = vmatpush.xpose.msra.mxu0 0.0
    %230 = vmatpush.xpose.msra.mxu0 0.0
    %231 = vmatpush.xpose.msra.mxu0 0.0
    %232 = vmatpush.xpose.msra.mxu0 0.0
    %233 = vmatpush.xpose.msra.mxu0 0.0
    %234 = vmatpush.xpose.msra.mxu0 0.0
    %235 = vmatpush.xpose.msra.mxu0 0.0
    %236 = vmatpush.xpose.msra.mxu0 0.0
    %237 = vmatpush.xpose.msra.mxu0 %v220
    %238 = vmatmul.f32.gmra.mxu0 %v217
    %v239 = vpop.f32.mrf.mxu0
    %v240 = vadd.f32 0.0, %v239
    %241 = vdwg.mxu0
    %vm242 = vcmask 49152
    %v243 = vsel %vm242, %v240, -inf
    %244 = vmax.xlane.f32.xlu0 %v243
    %v245 = vpop.xlane.xlu0 %244
    %v246 = vsub.f32 %v240, %v245
    %v247 = vmul.f32 %v246, 1.442695
    %v248 = vpow.pop %v247
    %v249 = vsel %vm242, %v248, 0.0
    %250 = vadd.xlane.f32.xlu0 %v249
    %v251 = vpop.xlane.xlu0 %250
    %v252 = vrcp.pop %v251
    %v253 = vmul.f32 %v248, %v252
    %vm254 = vcmask 56320
    %v256 = vsel %vm254, %v253, 0
    %vm258 = vcmask 1046528
    %v260 = vsel %vm258, %v117, 0
    %262 = vmatpush.msra.mxu0 0.0
    %263 = vmatpush.msra.mxu0 0.0
    %264 = vmatpush.msra.mxu0 0.0
    %265 = vmatpush.msra.mxu0 0.0
    %266 = vmatpush.msra.mxu0 0.0
    %267 = vmatpush.msra.mxu0 0.0
    %268 = vmatpush.msra.mxu0 0.0
    %269 = vmatpush.msra.mxu0 0.0
    %270 = vmatpush.msra.mxu0 0.0
    %271 = vmatpush.msra.mxu0 0.0
    %272 = vmatpush.msra.mxu0 0.0
    %273 = vmatpush.msra.mxu0 0.0
    %274 = vmatpush.msra.mxu0 0.0
    %275 = vmatpush.msra.mxu0 0.0
    %276 = vmatpush.msra.mxu0 0.0
    %277 = vmatpush.msra.mxu0 %v260
    %278 = vmatmul.f32.gmra.mxu0 %v256
    %v279 = vpop.f32.mrf.mxu0
    %v280 = vadd.f32 0.0, %v279
    %281 = vdwg.mxu0
    %v282 = vadd.f32 %v167, %v280
    %v283 = vadd.f32 %v282, %v128
    %v284 = vmax.f32 %v283, 0.0
    %v286 = vsel %vm75, %v284, 0
    %288 = vmatpush.msra.mxu0 0.0
    %289 = vmatpush.msra.mxu0 0.0
    %290 = vmatpush.msra.mxu0 0.0
    %291 = vmatpush.msra.mxu0 0.0
    %292 = vmatpush.msra.mxu0 0.0
    %293 = vmatpush.msra.mxu0 0.0
    %294 = vmatpush.msra.mxu0 0.0
    %295 = vmatpush.msra.mxu0 0.0
    %296 = vmatpush.msra.mxu0 0.0
    %297 = vmatpush.msra.mxu0 0.0
    %298 = vmatpush.msra.mxu0 0.0
    %299 = vmatpush.msra.mxu0 0.0
    %300 = vmatpush.msra.mxu0 %v132
    %301 = vmatpush.msra.mxu0 %v131
    %302 = vmatpush.msra.mxu0 %v130
    %303 = vmatpush.msra.mxu0 %v129
    %304 = vmatmul.f32.gmra.mxu0 %v286
    %v305 = vpop.f32.mrf.mxu0
    %v306 = vadd.f32 %v165, %v305
    %307 = vdwg.mxu0
    %v308 = vadd.f32 %v306, %v137
    %v309 = vxor.u32 %v308, 2147483648
    %v310 = vmul.f32 %v309, 1.442695
    %v311 = vpow.pop %v310
    %v312 = vadd.f32 %v311, 1.0
    %v313 = vrcp.pop %v312
    %v314 = vmul.f32 %v312, %v313
    %v315 = vsub.f32 1.0, %v314
    %v316 = vmul.f32 %v313, %v315
    %v317 = vadd.f32 %v313, %v316
    %vm318 = vweird.f32 %v312
    %vm319 = vweird.f32 %v313
    %vm320 = vmor %vm318, %vm319
    %v321 = vsel %vm320, %v313, %v317
    %v322 = vand.u32 2147483647, %v312
    %vm323 = vcmp.eq.f32.partialorder %v322, 8.507059e+37
    %v324 = vand.u32 %v312, 2147483648
    %v325 = vor.u32 1.1754944e-38, %v324
    %v326 = vsel %vm323, %v325, %v321
    %v327 = vmul.f32 1.0, %v326
    %v328 = vtanh.pop %v308
    %v329 = vmul.f32 %v327, %v143
    %331 = vrot.lane.b32.xlu0 %v328, 64
    %v332 = vpop.permute.xlu0 %331
    %v334 = vmul.f32 %v327, %v332
    %336 = vrot.lane.b32.xlu0 %v334, 32
    %v337 = vpop.permute.xlu0 %336
    %v339 = vadd.f32 %v329, %v337
    %v340 = vtanh.pop %v339
    %342 = vrot.lane.b32.xlu0 %v340, 64
    %v343 = vpop.permute.xlu0 %342
    %v345 = vmul.f32 %v327, %v343
    %347 = vrot.lane.b32.xlu0 %v345, 32
    %v348 = vpop.permute.xlu0 %347
    %v349 = vsel %vm75, %v348, 0
    %351 = vmatpush.msra.mxu0 0.0
    %352 = vmatpush.msra.mxu0 0.0
    %353 = vmatpush.msra.mxu0 0.0
    %354 = vmatpush.msra.mxu0 0.0
    %355 = vmatpush.msra.mxu0 0.0
    %356 = vmatpush.msra.mxu0 0.0
    %357 = vmatpush.msra.mxu0 0.0
    %358 = vmatpush.msra.mxu0 0.0
    %359 = vmatpush.msra.mxu0 0.0
    %360 = vmatpush.msra.mxu0 0.0
    %361 = vmatpush.msra.mxu0 0.0
    %362 = vmatpush.msra.mxu0 0.0
    %363 = vmatpush.msra.mxu0 %v141
    %364 = vmatpush.msra.mxu0 %v140
    %365 = vmatpush.msra.mxu0 %v139
    %366 = vmatpush.msra.mxu0 %v138
    %367 = vmatmul.f32.gmra.mxu0 %v349
    %v368 = vpop.f32.mrf.mxu0
    %v369 = vadd.f32 %v142, %v368
    %370 = vdwg.mxu0
    %vm371 = vcmask 516096
    %v372 = vsel %vm371, %v369, -inf
    %373 = vmax.xlane.f32.xlu0 %v372
    %v374 = vpop.xlane.xlu0 %373
    %v375 = vsub.f32 %v369, %v374
    %v376 = vmul.f32 %v375, 1.442695
    %v377 = vpow.pop %v376
    %v378 = vsel %vm371, %v377, 0.0
    %379 = vadd.xlane.f32.xlu0 %v378
    %v380 = vpop.xlane.xlu0 %379
    %v381 = vlog2.pop %v380
    %v382 = vmul.f32 %v381, 0.6931472
    %v383 = vadd.f32 %v382, %v374
    %v384 = vsub.f32 %v369, %v383
    %385 = vrot.lane.b32.xlu0 %v345, 96
    %v386 = vpop.permute.xlu0 %385
    %389 = vrot.lane.b32.xlu0 %v339, 64
    %v390 = vpop.permute.xlu0 %389
    %vm392 = vcmask 523264
    %v393 = vsel %vm392, %v384, %v386
    %vm394 = vcmask 785408
    %v395 = vsel %vm394, %v393, %v390
    %396 = vst [vmem:[#allocation8] sm:$0x1] %v395
    %397 = vst.msk [vmem:[#allocation9] sm:$0x1] %vm242, %v253
    // Predicated region
    $region30: #{tpu_custom_call.1} parent=1 // pred_check
      _
    $region31: #{tpu_custom_call.1} parent=1 // pred_check_branch
      %399 = sbr.rel (0) target = $region33
    $region32: #{tpu_custom_call.1} parent=1 // pred_region
      %401 = vsyncadd [#allocation4], 0
      %s403 = sshll.u32 [#allocation8], 4
      %s404 = int_to_ptr.vmem [resolvable:$true] %s403
      %s405 = sshll.u32 %s4, 4
      %s406 = int_to_ptr.hbm [resolvable:$true] %s405
      %408 = dma.vmem_to_hbm [thread:$0]  %s404, 16, %s406, [#allocation4]
    $region33: #{tpu_custom_call.1} parent=1 // pred_fallthru
      _
    // Predicated region
    $region34: #{tpu_custom_call.1} parent=1 // pred_check
      _
    $region35: #{tpu_custom_call.1} parent=1 // pred_check_branch
      %410 = sbr.rel (0) target = $region37
    $region36: #{tpu_custom_call.1} parent=1 // pred_region
      %412 = vsyncadd [#allocation10], 0
      %s414 = sshll.u32 [#allocation9], 4
      %s415 = int_to_ptr.vmem [resolvable:$true] %s414
      %s416 = sshll.u32 %s5, 4
      %s417 = int_to_ptr.hbm [resolvable:$true] %s416
      %419 = dma.vmem_to_hbm [thread:$0]  %s415, 16, %s417, [#allocation10]
    $region37: #{tpu_custom_call.1} parent=1 // pred_fallthru
      _
    // Predicated region
    $region38: #{tpu_custom_call.1} parent=1 // pred_check
      _
    $region39: #{tpu_custom_call.1} parent=1 // pred_check_branch
      %421 = sbr.rel (0) target = $region41
    $region40: #{tpu_custom_call.1} parent=1 // pred_region
      %423 = dma.done [#allocation4], 16
    $region41: #{tpu_custom_call.1} parent=1 // pred_fallthru
      _
    // Predicated region
    $region42: #{tpu_custom_call.1} parent=1 // pred_check
      _
    $region43: #{tpu_custom_call.1} parent=1 // pred_check_branch
      %425 = sbr.rel (0) target = $region45
    $region44: #{tpu_custom_call.1} parent=1 // pred_region
      %427 = dma.done [#allocation10], 16
    $region45: #{tpu_custom_call.1} parent=1 // pred_fallthru
      _
    %428 = vsyncpa [#allocation3], 1
    %429 = vsyncpa [#allocation6], 1
    %430 = vsyncpa [#allocation4], 1
    %431 = vsyncpa [#allocation10], 1

</llo_original>
